<compile_context>
chip_gen: v5e
topology: v5e:2x2
jax: 0.10.0
libtpu: 0.0.40
codegen_flags: <defaults>
</compile_context>

<pallas_src>
import jax
import jax.numpy as jnp
from jax import lax
from jax.experimental import pallas as pl
from jax.experimental.pallas import tpu as pltpu


# ---------------------------------------------------------------------------
# Pallas kernel
# ---------------------------------------------------------------------------
def _tokenizer_kernel(x_ref, w_ref, add_ref, o_ref):
    # x_ref:   (TB, N1, Kp)  patch vectors; row 0 of every batch element is all
    #                        zeros so the matmul contributes 0 to the cls slot.
    # w_ref:   (Kp, TE)      flattened conv weight tile (compute dtype).
    # add_ref: (N1, TE)      row 0 = class_embedding + pos[0],
    #                        rows 1..N = conv bias + pos[1:]            (f32)
    # o_ref:   (TB, N1, TE)  output tokens.
    tb, n1, kp = x_ref.shape
    te = o_ref.shape[-1]
    w = w_ref[...]
    add = add_ref[...]

    # Sublane granularity of the input dtype: 8 rows for f32, 16 for bf16, ...
    itemsize = jnp.dtype(x_ref.dtype).itemsize
    sub = 8 * max(1, 4 // itemsize)

    if tb == 1 or n1 % sub == 0:
        # The (TB, N1, Kp) -> (TB*N1, Kp) merge is a free layout view here:
        # one big MXU matmul, one aligned full-block store.
        x = x_ref[...].reshape(tb * n1, kp)
        proj = jnp.dot(x, w, preferred_element_type=jnp.float32)     # (tb*n1, te)
        o_ref[...] = (proj.reshape(tb, n1, te) + add[None, :, :]).astype(o_ref.dtype)
    elif tb <= 16:
        # Short, fully unrolled loop: TB matmuls, each followed by an aligned
        # full-slab (offset-0 sublane) store.
        for b in range(tb):
            proj = jnp.dot(x_ref[b], w, preferred_element_type=jnp.float32)
            o_ref[b] = (proj + add).astype(o_ref.dtype)
    else:
        def body(b, carry):
            proj = jnp.dot(x_ref[b], w, preferred_element_type=jnp.float32)
            o_ref[b] = (proj + add).astype(o_ref.dtype)
            return carry
        lax.fori_loop(0, tb, body, 0)


# ---------------------------------------------------------------------------
# Host-side glue (shifts, im2col) — plain XLA
# ---------------------------------------------------------------------------
def _shift2d_nhwc(img, dx, dy):
    # torchvision F.affine(translate=(dx, dy)) semantics with zero fill:
    # positive dx moves content right, positive dy moves content down:
    #   out[y, x] = img[y - dy, x - dx]
    B, H, W, C = img.shape
    padded = jnp.pad(
        img,
        ((0, 0),
         (max(dy, 0), max(-dy, 0)),
         (max(dx, 0), max(-dx, 0)),
         (0, 0)),
    )
    y0 = max(-dy, 0)
    x0 = max(-dx, 0)
    return padded[:, y0:y0 + H, x0:x0 + W, :]


def _stack_shifts_nhwc(x_nhwc, patch_size, translation_mode):
    # x_nhwc: (B, H, W, C).  Returns (B, H, W, 5*C): original + 4 shifted copies.
    sx = sy = patch_size // 2
    if translation_mode == "diagonal":
        shifts = [(-sx, -sy), (sx, -sy), (-sx, sy), (sx, sy)]
    elif translation_mode == "rectangular":
        shifts = [(0, sy), (0, -sy), (-sx, 0), (sx, 0)]
    else:
        raise ValueError("Invalid translation_mode")
    return jnp.concatenate(
        [x_nhwc] + [_shift2d_nhwc(x_nhwc, dx, dy) for dx, dy in shifts], axis=-1)


def _round_up(x, m):
    return (x + m - 1) // m * m


def _vmem_capacity_bytes():
    """Per-core VMEM capacity; conservative v7x value if the query fails."""
    try:
        info = pltpu.get_tpu_info()
        for name in ("vmem_capacity_bytes", "vmem_bytes", "vmem_size_bytes"):
            v = getattr(info, name, None)
            if v:
                return int(v)
    except Exception:
        pass
    return 64 << 20


# ---------------------------------------------------------------------------
# Public wrapper
# ---------------------------------------------------------------------------
def shift_patch_tokenizer(image, params, *, patch_size,
                          translation_mode="diagonal",
                          compute_dtype=jnp.bfloat16,
                          out_dtype=jnp.float32,
                          batch_block=None, e_block=None,
                          vmem_limit_bytes=None):
    """image: (B, C, H, W) NCHW.  Returns (B, num_patches + 1, embedding)."""
    B, C, H, W = image.shape
    P = patch_size
    if H % P or W % P:
        raise ValueError("The image size must be divisible by the patch size")
    Hp, Wp = H // P, W // P
    N = Hp * Wp
    N1 = N + 1

    # NCHW -> NHWC and cast once, so shifts / concat / im2col run at compute
    # width (usually bf16) instead of f32.
    x_nhwc = jnp.transpose(image, (0, 2, 3, 1)).astype(compute_dtype)
    stacked = _stack_shifts_nhwc(x_nhwc, P, translation_mode)      # (B, H, W, 5C)
    TC = stacked.shape[-1]
    K = TC * P * P
    Kp = _round_up(K, 128)

    # im2col with (kh, kw, c) minor ordering: only an adjacent-axis swap of the
    # big tensor.  A single pad both prepends the zero "cls" patch row and pads
    # the contraction dim K -> Kp.
    patches = stacked.reshape(B, Hp, P, Wp, P, TC)
    patches = patches.transpose(0, 1, 3, 2, 4, 5).reshape(B, N, K)
    patches = jnp.pad(patches, ((0, 0), (1, 0), (0, Kp - K)))      # (B, N1, Kp)

    conv_w = params["conv_w"]                    # (E, TC, P, P), OIHW
    E = conv_w.shape[0]
    Ep = _round_up(E, 128)
    # Matching permutation applied to the small weight: w_mat[(kh*P+kw)*TC+c, e]
    w_mat = conv_w.transpose(2, 3, 1, 0).reshape(K, E).astype(compute_dtype)
    w_mat = jnp.pad(w_mat, ((0, Kp - K), (0, Ep - E)))             # (Kp, Ep)

    pos = params["positional"].reshape(N1, E).astype(jnp.float32)
    bias = params["conv_b"].astype(jnp.float32)
    cls = params["class_embedding"].reshape(E).astype(jnp.float32)
    add_tab = jnp.concatenate([(cls + pos[0])[None, :],
                               bias[None, :] + pos[1:, :]], axis=0)  # (N1, E)
    add_tab = jnp.pad(add_tab, ((0, 0), (0, Ep - E)))                # (N1, Ep)

    # --- tiling --------------------------------------------------------------
    cbytes = jnp.dtype(compute_dtype).itemsize
    obytes = jnp.dtype(out_dtype).itemsize

    if e_block is None:
        TE = Ep        # whole weight resident; fetched from HBM once.
        # (On v7x with tiny batches, pass e_block=Ep//2 to give the 2nd
        #  TensorCore a disjoint E half.)
    else:
        TE = int(e_block)
        if TE % 128 or Ep % TE:
            raise ValueError("e_block must be a multiple of 128 dividing padded E")
    ne = Ep // TE

    vmem_cap = _vmem_capacity_bytes()
    budget = int(0.45 * vmem_cap)   # leave room for compiler scratch / semaphores

    def step_bytes(tb):
        return (2 * tb * N1 * Kp * cbytes      # x tile (double-buffered)
                + 2 * Kp * TE * cbytes         # weight tile
                + 2 * N1 * TE * 4              # add table (f32)
                + 2 * tb * N1 * TE * obytes)   # output tile

    if batch_block is not None:
        TB = max(1, min(int(batch_block), B))
    else:
        TB = max(1, min(B, 1024 // N1))        # target ~1024 MXU rows per step
    while B % TB:
        TB -= 1
    while TB > 1 and step_bytes(TB) > budget:
        TB -= 1
        while B % TB:
            TB -= 1
    nb = B // TB

    if vmem_limit_bytes is None:
        vmem_limit_bytes = int(min(0.75 * vmem_cap,
                                   max(2 * step_bytes(TB) + (8 << 20), 32 << 20)))

    # Grid order: stream the larger of {activations, weight} from HBM only once.
    w_restream = nb * Kp * Ep * cbytes          # weight traffic if batch is outer
    x_restream = ne * B * N1 * Kp * cbytes      # activation traffic if E is outer
    e_outer = (ne > 1) and (w_restream > x_restream)
    if e_outer:
        grid = (ne, nb)
        x_map = lambda e, b: (b, 0, 0)
        w_map = lambda e, b: (0, e)
        a_map = lambda e, b: (0, e)
        o_map = lambda e, b: (b, 0, e)
    else:
        grid = (nb, ne)
        x_map = lambda b, e: (b, 0, 0)
        w_map = lambda b, e: (0, e)
        a_map = lambda b, e: (0, e)
        o_map = lambda b, e: (b, 0, e)

    cost = pl.CostEstimate(
        flops=2 * B * N1 * Kp * Ep,
        transcendentals=0,
        bytes_accessed=(patches.size * cbytes + w_mat.size * cbytes
                        + add_tab.size * 4 + B * N1 * Ep * obytes),
    )

    grid_spec = pltpu.PrefetchScalarGridSpec(
        num_scalar_prefetch=0,
        grid=grid,
        in_specs=[
            pl.BlockSpec((TB, N1, Kp), x_map),
            pl.BlockSpec((Kp, TE), w_map),
            pl.BlockSpec((N1, TE), a_map),
        ],
        out_specs=pl.BlockSpec((TB, N1, TE), o_map),
    )

    out = pl.pallas_call(
        _tokenizer_kernel,
        out_shape=jax.ShapeDtypeStruct((B, N1, Ep), out_dtype),
        grid_spec=grid_spec,
        compiler_params=pltpu.CompilerParams(
            dimension_semantics=("parallel", "parallel"),
            vmem_limit_bytes=int(vmem_limit_bytes)),
        cost_estimate=cost,
    )(patches, w_mat, add_tab)

    if Ep != E:
        out = out[:, :, :E]
    return out


# ---------------------------------------------------------------------------
# Pure-JAX reference mirroring the PyTorch forward
# ---------------------------------------------------------------------------
def reference(image, params, *, patch_size, translation_mode="diagonal"):
    P = patch_size
    x_nhwc = jnp.transpose(image.astype(jnp.float32), (0, 2, 3, 1))
    stacked = jnp.transpose(
        _stack_shifts_nhwc(x_nhwc, P, translation_mode), (0, 3, 1, 2))  # NCHW
    out = lax.conv_general_dilated(
        stacked, params["conv_w"].astype(jnp.float32),
        window_strides=(P, P), padding="VALID",
        dimension_numbers=("NCHW", "OIHW", "NCHW"))
    out = out + params["conv_b"][None, :, None, None]
    B, E, Hp, Wp = out.shape
    toks = out.reshape(B, E, Hp * Wp).transpose(0, 2, 1)
    cls = jnp.broadcast_to(params["class_embedding"], (B, 1, E))
    toks = jnp.concatenate([cls, toks], axis=1)
    return toks + params["positional"]


if __name__ == "__main__":
    # Small config: image_size=16, patch_size=4, num_channels=4, embedding=32
    B, C, H = 2, 4, 16
    P, E = 4, 32
    TC = C * 5
    N = (H // P) ** 2

    key = jax.random.PRNGKey(0)
    k_img, k_w, k_b, k_cls, k_pos = jax.random.split(key, 5)

    image = jax.random.normal(k_img, (B, C, H, H), dtype=jnp.float32)
    # Module parameter shapes; random instead of torch's all-zeros init so the
    # bias / class-token / positional add paths are actually exercised.
    params = {
        "conv_w": 0.05 * jax.random.normal(k_w, (E, TC, P, P), dtype=jnp.float32),
        "conv_b": 0.05 * jax.random.normal(k_b, (E,), dtype=jnp.float32),
        "class_embedding": 0.05 * jax.random.normal(k_cls, (1, 1, E), dtype=jnp.float32),
        "positional": 0.05 * jax.random.normal(k_pos, (1, N + 1, E), dtype=jnp.float32),
    }

    ref_diag = jax.block_until_ready(
        reference(image, params, patch_size=P, translation_mode="diagonal"))
    ref_rect = jax.block_until_ready(
        reference(image, params, patch_size=P, translation_mode="rectangular"))

    # f32 operand path (TB=2 -> in-kernel per-batch-row loop) — tight check.
    out_f32 = jax.block_until_ready(
        shift_patch_tokenizer(image, params, patch_size=P,
                              translation_mode="diagonal",
                              compute_dtype=jnp.float32))
    assert out_f32.shape == (B, N + 1, E), out_f32.shape
    assert jnp.allclose(out_f32, ref_diag, atol=5e-4, rtol=5e-4), "f32 diagonal mismatch"

    out_rect = jax.block_until_ready(
        shift_patch_tokenizer(image, params, patch_size=P,
                              translation_mode="rectangular",
                              compute_dtype=jnp.float32))
    assert jnp.allclose(out_rect, ref_rect, atol=5e-4, rtol=5e-4), "f32 rectangular mismatch"

    # batch_block=1 exercises the merged single-matmul kernel path.
    out_tb1 = jax.block_until_ready(
        shift_patch_tokenizer(image, params, patch_size=P,
                              translation_mode="diagonal",
                              compute_dtype=jnp.float32, batch_block=1))
    assert jnp.allclose(out_tb1, ref_diag, atol=5e-4, rtol=5e-4), "TB=1 mismatch"

    # Default bf16 operand path with bf16 output (f32 accumulation) — loose tol.
    out_bf16 = jax.block_until_ready(
        shift_patch_tokenizer(image, params, patch_size=P,
                              translation_mode="diagonal",
                              out_dtype=jnp.bfloat16))
    assert out_bf16.shape == (B, N + 1, E), out_bf16.shape
    assert jnp.allclose(out_bf16.astype(jnp.float32), ref_diag,
                        atol=5e-2, rtol=5e-2), "bf16 diagonal mismatch"

    print("KERNEL_OK")
</pallas_src>

<mosaic_0001>
module attributes {stable_mosaic.version = 11 : i64} {
  func.func @_tokenizer_kernel(%arg0: i32, %arg1: i32, %arg2: memref<2x17x384xf32, #tpu.memory_space<vmem>>, %arg3: memref<384x128xf32, #tpu.memory_space<vmem>>, %arg4: memref<17x128xf32, #tpu.memory_space<vmem>>, %arg5: memref<2x17x128xf32, #tpu.memory_space<vmem>>) attributes {dimension_semantics = [#tpu.dimension_semantics<parallel>, #tpu.dimension_semantics<parallel>], iteration_bounds = array<i64: 1, 1>, scalar_prefetch = 0 : i64, scratch_operands = 0 : i64, tpu.core_type = #tpu.core_type<tc>, window_params = [{transform_indices = @transform_0, window_bounds = array<i64: 2, 17, 384>}, {transform_indices = @transform_1, window_bounds = array<i64: 384, 128>}, {transform_indices = @transform_2, window_bounds = array<i64: 17, 128>}, {transform_indices = @transform_3, window_bounds = array<i64: 2, 17, 128>}]} {
    %c0 = arith.constant 0 : index
    %c0_0 = arith.constant 0 : index
    %0 = vector.load %arg3[%c0, %c0_0] : memref<384x128xf32, #tpu.memory_space<vmem>>, vector<384x128xf32>
    %c0_1 = arith.constant 0 : index
    %c0_2 = arith.constant 0 : index
    %1 = vector.load %arg4[%c0_1, %c0_2] : memref<17x128xf32, #tpu.memory_space<vmem>>, vector<17x128xf32>
    %c0_3 = arith.constant 0 : index
    %c0_4 = arith.constant 0 : index
    %c0_5 = arith.constant 0 : index
    %2 = vector.load %arg2[%c0_3, %c0_4, %c0_5] : memref<2x17x384xf32, #tpu.memory_space<vmem>>, vector<1x17x384xf32>
    %3 = vector.shape_cast %2 : vector<1x17x384xf32> to vector<17x384xf32>
    %cst = arith.constant dense<0.000000e+00> : vector<17x128xf32>
    %4 = tpu.matmul %3, %0, %cst {dimension_numbers = #tpu.dot_dimension_numbers<[1], [0], [0], [1], [0, 0, 1, 1], [], []>} : vector<17x384xf32>, vector<384x128xf32>, vector<17x128xf32> -> vector<17x128xf32>
    %5 = arith.addf %4, %1 : vector<17x128xf32>
    %c0_6 = arith.constant 0 : index
    %c0_7 = arith.constant 0 : index
    %c0_8 = arith.constant 0 : index
    %6 = vector.load %arg5[%c0_6, %c0_7, %c0_8] : memref<2x17x128xf32, #tpu.memory_space<vmem>>, vector<1x17x128xf32>
    %7 = vector.shape_cast %6 : vector<1x17x128xf32> to vector<17x128xf32>
    %8 = vector.shape_cast %5 : vector<17x128xf32> to vector<1x17x128xf32>
    tpu.vector_store %arg5[%c0_6, %c0_7, %c0_8], %8 {strides = array<i32>} : memref<2x17x128xf32, #tpu.memory_space<vmem>>, vector<1x17x128xf32>,
    %c1 = arith.constant 1 : index
    %c0_9 = arith.constant 0 : index
    %c0_10 = arith.constant 0 : index
    %9 = vector.load %arg2[%c1, %c0_9, %c0_10] : memref<2x17x384xf32, #tpu.memory_space<vmem>>, vector<1x17x384xf32>
    %10 = vector.shape_cast %9 : vector<1x17x384xf32> to vector<17x384xf32>
    %cst_11 = arith.constant dense<0.000000e+00> : vector<17x128xf32>
    %11 = tpu.matmul %10, %0, %cst_11 {dimension_numbers = #tpu.dot_dimension_numbers<[1], [0], [0], [1], [0, 0, 1, 1], [], []>} : vector<17x384xf32>, vector<384x128xf32>, vector<17x128xf32> -> vector<17x128xf32>
    %12 = arith.addf %11, %1 : vector<17x128xf32>
    %c1_12 = arith.constant 1 : index
    %c0_13 = arith.constant 0 : index
    %c0_14 = arith.constant 0 : index
    %13 = vector.load %arg5[%c1_12, %c0_13, %c0_14] : memref<2x17x128xf32, #tpu.memory_space<vmem>>, vector<1x17x128xf32>
    %14 = vector.shape_cast %13 : vector<1x17x128xf32> to vector<17x128xf32>
    %15 = vector.shape_cast %12 : vector<17x128xf32> to vector<1x17x128xf32>
    tpu.vector_store %arg5[%c1_12, %c0_13, %c0_14], %15 {strides = array<i32>} : memref<2x17x128xf32, #tpu.memory_space<vmem>>, vector<1x17x128xf32>,
    return
  }
  func.func @transform_0(%arg0: i32, %arg1: i32) -> (i32, i32, i32) {
    %c0_i32 = arith.constant 0 : i32
    %c0_i32_0 = arith.constant 0 : i32
    %c0_i32_1 = arith.constant 0 : i32
    return %arg0, %c0_i32, %c0_i32_0 : i32, i32, i32
  }
  func.func @transform_1(%arg0: i32, %arg1: i32) -> (i32, i32) {
    %c0_i32 = arith.constant 0 : i32
    %c0_i32_0 = arith.constant 0 : i32
    return %c0_i32, %arg1 : i32, i32
  }
  func.func @transform_2(%arg0: i32, %arg1: i32) -> (i32, i32) {
    %c0_i32 = arith.constant 0 : i32
    %c0_i32_0 = arith.constant 0 : i32
    return %c0_i32, %arg1 : i32, i32
  }
  func.func @transform_3(%arg0: i32, %arg1: i32) -> (i32, i32, i32) {
    %c0_i32 = arith.constant 0 : i32
    %c0_i32_0 = arith.constant 0 : i32
    return %arg0, %c0_i32, %arg1 : i32, i32, i32
  }
}

</mosaic_0001>

<llo_original>
// kernel: tpu_custom_call.1
$region0: #{tpu_custom_call.1}
  #allocation0 [shape = 'u32[]', space=smem, size = 0x4, offset = 0x4, fixed_abs, tag = 'smem constant byte address 0x4 - core index']
  #allocation1 [shape = 'u32[72,128]{1,0:T(1,128)}', space=vmem, size = 0x9000, scoped, tag = 'internal scratch']
  %s0 = inlined_call_operand.vmem [shape: f32[2,17,384], index: 0, kind: input, shape index: {}]
  %s1 = inlined_call_operand.hbm [shape: f32[384,128], index: 1, kind: input, shape index: {}]
  %s2 = inlined_call_operand.vmem [shape: f32[17,128], index: 2, kind: input, shape index: {}]
  %s3 = inlined_call_operand.vmem [shape: f32[2,17,128], index: 3, kind: output, shape index: {}]
  %s4 = sld [smem:[#allocation0]]
  $region26: #{tpu_custom_call.1} parent=0
    _
  %s6 = ssub.s32 1, %s4
  %s7 = scalar_select 0, %s6, %s4
  $region1: #{tpu_custom_call.1} parent=0
    #allocation2 [shape = 'u8[196608]{0}', space=vmem, size = 0x30000, scoped, tag = 'input window, operand 1, single buffered']
    #allocation3 [shape = 's32[1]{0}', space=sflag, size = 0x4, scoped, tag = 'scoped memory for tpu_custom_call.1']
    %8 = vsyncpa [#allocation3], 0
    // Predicated region
    $region2: #{tpu_custom_call.1} parent=1 // pred_check
      _
    $region3: #{tpu_custom_call.1} parent=1 // pred_check_branch
      %10 = sbr.rel (0) target = $region5
    $region4: #{tpu_custom_call.1} parent=1 // pred_region
      _
    $region5: #{tpu_custom_call.1} parent=1 // pred_fallthru
      _
    // Predicated region
    $region6: #{tpu_custom_call.1} parent=1 // pred_check
      _
    $region7: #{tpu_custom_call.1} parent=1 // pred_check_branch
      %12 = sbr.rel (0) target = $region9
    $region8: #{tpu_custom_call.1} parent=1 // pred_region
      %14 = vsyncadd [#allocation3], 0
      %s15 = sshll.u32 %s1, 4
      %s16 = int_to_ptr.hbm [resolvable:$true] %s15
      %s17 = sshll.u32 [#allocation2], 4
      %s18 = int_to_ptr.vmem [resolvable:$true] %s17
      %23 = dma.hbm_to_vmem [thread:$0]  %s16, 6144, %s18, [#allocation3], 128, 128, 8
    $region9: #{tpu_custom_call.1} parent=1 // pred_fallthru
      _
    // Predicated region
    $region10: #{tpu_custom_call.1} parent=1 // pred_check
      _
    $region11: #{tpu_custom_call.1} parent=1 // pred_check_branch
      %25 = sbr.rel (0) target = $region13
    $region12: #{tpu_custom_call.1} parent=1 // pred_region
      _
    $region13: #{tpu_custom_call.1} parent=1 // pred_fallthru
      _
    // Predicated region
    $region14: #{tpu_custom_call.1} parent=1 // pred_check
      _
    $region15: #{tpu_custom_call.1} parent=1 // pred_check_branch
      %27 = sbr.rel (0) target = $region17
    $region16: #{tpu_custom_call.1} parent=1 // pred_region
      %29 = dma.done [#allocation3], 6144
    $region17: #{tpu_custom_call.1} parent=1 // pred_fallthru
      _
    %v30 = vld [vmem:[#allocation2] sm:$0xff]
    %v31 = vld [vmem:[#allocation2 + $0x8] sm:$0xff]
    %v32 = vld [vmem:[#allocation2 + $0x10] sm:$0xff]
    %v33 = vld [vmem:[#allocation2 + $0x18] sm:$0xff]
    %v34 = vld [vmem:[#allocation2 + $0x20] sm:$0xff]
    %v35 = vld [vmem:[#allocation2 + $0x28] sm:$0xff]
    %v36 = vld [vmem:[#allocation2 + $0x30] sm:$0xff]
    %v37 = vld [vmem:[#allocation2 + $0x38] sm:$0xff]
    %v38 = vld [vmem:[#allocation2 + $0x40] sm:$0xff]
    %v39 = vld [vmem:[#allocation2 + $0x48] sm:$0xff]
    %v40 = vld [vmem:[#allocation2 + $0x50] sm:$0xff]
    %v41 = vld [vmem:[#allocation2 + $0x58] sm:$0xff]
    %v42 = vld [vmem:[#allocation2 + $0x60] sm:$0xff]
    %v43 = vld [vmem:[#allocation2 + $0x68] sm:$0xff]
    %v44 = vld [vmem:[#allocation2 + $0x70] sm:$0xff]
    %v45 = vld [vmem:[#allocation2 + $0x78] sm:$0xff]
    %v46 = vld [vmem:[#allocation2 + $0x80] sm:$0xff]
    %v47 = vld [vmem:[#allocation2 + $0x88] sm:$0xff]
    %v48 = vld [vmem:[#allocation2 + $0x90] sm:$0xff]
    %v49 = vld [vmem:[#allocation2 + $0x98] sm:$0xff]
    %v50 = vld [vmem:[#allocation2 + $0xa0] sm:$0xff]
    %v51 = vld [vmem:[#allocation2 + $0xa8] sm:$0xff]
    %v52 = vld [vmem:[#allocation2 + $0xb0] sm:$0xff]
    %v53 = vld [vmem:[#allocation2 + $0xb8] sm:$0xff]
    %v54 = vld [vmem:[#allocation2 + $0xc0] sm:$0xff]
    %v55 = vld [vmem:[#allocation2 + $0xc8] sm:$0xff]
    %v56 = vld [vmem:[#allocation2 + $0xd0] sm:$0xff]
    %v57 = vld [vmem:[#allocation2 + $0xd8] sm:$0xff]
    %v58 = vld [vmem:[#allocation2 + $0xe0] sm:$0xff]
    %v59 = vld [vmem:[#allocation2 + $0xe8] sm:$0xff]
    %v60 = vld [vmem:[#allocation2 + $0xf0] sm:$0xff]
    %v61 = vld [vmem:[#allocation2 + $0xf8] sm:$0xff]
    %v62 = vld [vmem:[#allocation2 + $0x100] sm:$0xff]
    %v63 = vld [vmem:[#allocation2 + $0x108] sm:$0xff]
    %v64 = vld [vmem:[#allocation2 + $0x110] sm:$0xff]
    %v65 = vld [vmem:[#allocation2 + $0x118] sm:$0xff]
    %v66 = vld [vmem:[#allocation2 + $0x120] sm:$0xff]
    %v67 = vld [vmem:[#allocation2 + $0x128] sm:$0xff]
    %v68 = vld [vmem:[#allocation2 + $0x130] sm:$0xff]
    %v69 = vld [vmem:[#allocation2 + $0x138] sm:$0xff]
    %v70 = vld [vmem:[#allocation2 + $0x140] sm:$0xff]
    %v71 = vld [vmem:[#allocation2 + $0x148] sm:$0xff]
    %v72 = vld [vmem:[#allocation2 + $0x150] sm:$0xff]
    %v73 = vld [vmem:[#allocation2 + $0x158] sm:$0xff]
    %v74 = vld [vmem:[#allocation2 + $0x160] sm:$0xff]
    %v75 = vld [vmem:[#allocation2 + $0x168] sm:$0xff]
    %v76 = vld [vmem:[#allocation2 + $0x170] sm:$0xff]
    %v77 = vld [vmem:[#allocation2 + $0x178] sm:$0xff]
    %v78 = vld [vmem:[%s2] sm:$0xff]
    %v79 = vld [vmem:[%s2 + $0x8] sm:$0xff]
    %v80 = vld [vmem:[%s2 + $0x10] sm:$0x1]
    %v81 = vld [vmem:[%s0] sm:$0xff]
    %v82 = vld [vmem:[%s0 + $0x8] sm:$0xff]
    %v83 = vld [vmem:[%s0 + $0x10] sm:$0xff]
    %v84 = vld [vmem:[%s0 + $0x18] sm:$0xff]
    %v85 = vld [vmem:[%s0 + $0x20] sm:$0xff]
    %v86 = vld [vmem:[%s0 + $0x28] sm:$0xff]
    %v87 = vld [vmem:[%s0 + $0x30] sm:$0x1]
    %v88 = vld [vmem:[%s0 + $0x38] sm:$0x1]
    %v89 = vld [vmem:[%s0 + $0x40] sm:$0x1]
    %90 = vmatpush.msra.mxu0 %v45
    %91 = vmatpush.msra.mxu0 %v44
    %92 = vmatpush.msra.mxu0 %v43
    %93 = vmatpush.msra.mxu0 %v42
    %94 = vmatpush.msra.mxu0 %v41
    %95 = vmatpush.msra.mxu0 %v40
    %96 = vmatpush.msra.mxu0 %v39
    %97 = vmatpush.msra.mxu0 %v38
    %98 = vmatpush.msra.mxu0 %v37
    %99 = vmatpush.msra.mxu0 %v36
    %100 = vmatpush.msra.mxu0 %v35
    %101 = vmatpush.msra.mxu0 %v34
    %102 = vmatpush.msra.mxu0 %v33
    %103 = vmatpush.msra.mxu0 %v32
    %104 = vmatpush.msra.mxu0 %v31
    %105 = vmatpush.msra.mxu0 %v30
    %106 = vmatmul.f32.gmra.mxu0 %v81
    %v107 = vpop.f32.mrf.mxu0
    %v108 = vadd.f32 %v78, %v107
    %109 = vmatmul.f32.gmra.mxu0 %v84
    %v110 = vpop.f32.mrf.mxu0
    %v111 = vadd.f32 %v79, %v110
    %112 = vmatmul.f32.gmra.mxu0 %v87
    %v113 = vpop.f32.mrf.mxu0
    %v114 = vadd.f32 %v80, %v113
    %115 = vdwg.mxu0
    %116 = vmatpush.msra.mxu0 %v61
    %117 = vmatpush.msra.mxu0 %v60
    %118 = vmatpush.msra.mxu0 %v59
    %119 = vmatpush.msra.mxu0 %v58
    %120 = vmatpush.msra.mxu0 %v57
    %121 = vmatpush.msra.mxu0 %v56
    %122 = vmatpush.msra.mxu0 %v55
    %123 = vmatpush.msra.mxu0 %v54
    %124 = vmatpush.msra.mxu0 %v53
    %125 = vmatpush.msra.mxu0 %v52
    %126 = vmatpush.msra.mxu0 %v51
    %127 = vmatpush.msra.mxu0 %v50
    %128 = vmatpush.msra.mxu0 %v49
    %129 = vmatpush.msra.mxu0 %v48
    %130 = vmatpush.msra.mxu0 %v47
    %131 = vmatpush.msra.mxu0 %v46
    %132 = vmatmul.f32.gmra.mxu0 %v82
    %v133 = vpop.f32.mrf.mxu0
    %v134 = vadd.f32 %v108, %v133
    %135 = vmatmul.f32.gmra.mxu0 %v85
    %v136 = vpop.f32.mrf.mxu0
    %v137 = vadd.f32 %v111, %v136
    %138 = vmatmul.f32.gmra.mxu0 %v88
    %v139 = vpop.f32.mrf.mxu0
    %v140 = vadd.f32 %v114, %v139
    %141 = vdwg.mxu0
    %142 = vmatpush.msra.mxu0 %v77
    %143 = vmatpush.msra.mxu0 %v76
    %144 = vmatpush.msra.mxu0 %v75
    %145 = vmatpush.msra.mxu0 %v74
    %146 = vmatpush.msra.mxu0 %v73
    %147 = vmatpush.msra.mxu0 %v72
    %148 = vmatpush.msra.mxu0 %v71
    %149 = vmatpush.msra.mxu0 %v70
    %150 = vmatpush.msra.mxu0 %v69
    %151 = vmatpush.msra.mxu0 %v68
    %152 = vmatpush.msra.mxu0 %v67
    %153 = vmatpush.msra.mxu0 %v66
    %154 = vmatpush.msra.mxu0 %v65
    %155 = vmatpush.msra.mxu0 %v64
    %156 = vmatpush.msra.mxu0 %v63
    %157 = vmatpush.msra.mxu0 %v62
    %158 = vmatmul.f32.gmra.mxu0 %v83
    %v159 = vpop.f32.mrf.mxu0
    %v160 = vadd.f32 %v134, %v159
    %161 = vmatmul.f32.gmra.mxu0 %v86
    %v162 = vpop.f32.mrf.mxu0
    %v163 = vadd.f32 %v137, %v162
    %164 = vmatmul.f32.gmra.mxu0 %v89
    %v165 = vpop.f32.mrf.mxu0
    %v166 = vadd.f32 %v140, %v165
    %167 = vdwg.mxu0
    %168 = vst [vmem:[%s3] sm:$0xff] %v160
    %169 = vst [vmem:[%s3 + $0x8] sm:$0xff] %v163
    %170 = vst [vmem:[%s3 + $0x10] sm:$0x1] %v166
    %s171 = scalar_lea.vmem %s0, 72
    %v172 = vld [vmem:[%s171] sm:$0xff]
    %v173 = vld [vmem:[%s171 + $0x8] sm:$0xff]
    %v174 = vld [vmem:[%s171 + $0x10] sm:$0xff]
    %v175 = vld [vmem:[%s171 + $0x18] sm:$0xff]
    %v176 = vld [vmem:[%s171 + $0x20] sm:$0xff]
    %v177 = vld [vmem:[%s171 + $0x28] sm:$0xff]
    %v178 = vld [vmem:[%s171 + $0x30] sm:$0x1]
    %v179 = vld [vmem:[%s171 + $0x38] sm:$0x1]
    %v180 = vld [vmem:[%s171 + $0x40] sm:$0x1]
    %181 = vmatpush.msra.mxu0 %v45
    %182 = vmatpush.msra.mxu0 %v44
    %183 = vmatpush.msra.mxu0 %v43
    %184 = vmatpush.msra.mxu0 %v42
    %185 = vmatpush.msra.mxu0 %v41
    %186 = vmatpush.msra.mxu0 %v40
    %187 = vmatpush.msra.mxu0 %v39
    %188 = vmatpush.msra.mxu0 %v38
    %189 = vmatpush.msra.mxu0 %v37
    %190 = vmatpush.msra.mxu0 %v36
    %191 = vmatpush.msra.mxu0 %v35
    %192 = vmatpush.msra.mxu0 %v34
    %193 = vmatpush.msra.mxu0 %v33
    %194 = vmatpush.msra.mxu0 %v32
    %195 = vmatpush.msra.mxu0 %v31
    %196 = vmatpush.msra.mxu0 %v30
    %197 = vmatmul.f32.gmra.mxu0 %v172
    %v198 = vpop.f32.mrf.mxu0
    %v199 = vadd.f32 %v78, %v198
    %200 = vmatmul.f32.gmra.mxu0 %v175
    %v201 = vpop.f32.mrf.mxu0
    %v202 = vadd.f32 %v79, %v201
    %203 = vmatmul.f32.gmra.mxu0 %v178
    %v204 = vpop.f32.mrf.mxu0
    %v205 = vadd.f32 %v80, %v204
    %206 = vdwg.mxu0
    %207 = vmatpush.msra.mxu0 %v61
    %208 = vmatpush.msra.mxu0 %v60
    %209 = vmatpush.msra.mxu0 %v59
    %210 = vmatpush.msra.mxu0 %v58
    %211 = vmatpush.msra.mxu0 %v57
    %212 = vmatpush.msra.mxu0 %v56
    %213 = vmatpush.msra.mxu0 %v55
    %214 = vmatpush.msra.mxu0 %v54
    %215 = vmatpush.msra.mxu0 %v53
    %216 = vmatpush.msra.mxu0 %v52
    %217 = vmatpush.msra.mxu0 %v51
    %218 = vmatpush.msra.mxu0 %v50
    %219 = vmatpush.msra.mxu0 %v49
    %220 = vmatpush.msra.mxu0 %v48
    %221 = vmatpush.msra.mxu0 %v47
    %222 = vmatpush.msra.mxu0 %v46
    %223 = vmatmul.f32.gmra.mxu0 %v173
    %v224 = vpop.f32.mrf.mxu0
    %v225 = vadd.f32 %v199, %v224
    %226 = vmatmul.f32.gmra.mxu0 %v176
    %v227 = vpop.f32.mrf.mxu0
    %v228 = vadd.f32 %v202, %v227
    %229 = vmatmul.f32.gmra.mxu0 %v179
    %v230 = vpop.f32.mrf.mxu0
    %v231 = vadd.f32 %v205, %v230
    %232 = vdwg.mxu0
    %233 = vmatpush.msra.mxu0 %v77
    %234 = vmatpush.msra.mxu0 %v76
    %235 = vmatpush.msra.mxu0 %v75
    %236 = vmatpush.msra.mxu0 %v74
    %237 = vmatpush.msra.mxu0 %v73
    %238 = vmatpush.msra.mxu0 %v72
    %239 = vmatpush.msra.mxu0 %v71
    %240 = vmatpush.msra.mxu0 %v70
    %241 = vmatpush.msra.mxu0 %v69
    %242 = vmatpush.msra.mxu0 %v68
    %243 = vmatpush.msra.mxu0 %v67
    %244 = vmatpush.msra.mxu0 %v66
    %245 = vmatpush.msra.mxu0 %v65
    %246 = vmatpush.msra.mxu0 %v64
    %247 = vmatpush.msra.mxu0 %v63
    %248 = vmatpush.msra.mxu0 %v62
    %249 = vmatmul.f32.gmra.mxu0 %v174
    %v250 = vpop.f32.mrf.mxu0
    %v251 = vadd.f32 %v225, %v250
    %252 = vmatmul.f32.gmra.mxu0 %v177
    %v253 = vpop.f32.mrf.mxu0
    %v254 = vadd.f32 %v228, %v253
    %255 = vmatmul.f32.gmra.mxu0 %v180
    %v256 = vpop.f32.mrf.mxu0
    %v257 = vadd.f32 %v231, %v256
    %258 = vdwg.mxu0
    %s259 = scalar_lea.vmem %s3, 24
    %260 = vst [vmem:[%s259] sm:$0xff] %v251
    %261 = vst [vmem:[%s259 + $0x8] sm:$0xff] %v254
    %262 = vst [vmem:[%s259 + $0x10] sm:$0x1] %v257
    // Predicated region
    $region18: #{tpu_custom_call.1} parent=1 // pred_check
      _
    $region19: #{tpu_custom_call.1} parent=1 // pred_check_branch
      %264 = sbr.rel (0) target = $region21
    $region20: #{tpu_custom_call.1} parent=1 // pred_region
      _
    $region21: #{tpu_custom_call.1} parent=1 // pred_fallthru
      _
    // Predicated region
    $region22: #{tpu_custom_call.1} parent=1 // pred_check
      _
    $region23: #{tpu_custom_call.1} parent=1 // pred_check_branch
      %266 = sbr.rel (0) target = $region25
    $region24: #{tpu_custom_call.1} parent=1 // pred_region
      _
    $region25: #{tpu_custom_call.1} parent=1 // pred_fallthru
      _
    %267 = vsyncpa [#allocation3], 1

</llo_original>
